<compile_context>
chip_gen: v6e
topology: v6e:2x2x1
jax: 0.10.0
libtpu: 0.0.40
codegen_flags: <defaults>
</compile_context>

<pallas_src>
import jax
import jax.numpy as jnp
from jax.experimental import pallas as pl
from jax.experimental.pallas import tpu as pltpu

LANES = 128
SUBLANES = 8
MAX_TILE_ROWS = 8192           # (8192, 128) f32 = 4 MiB per input per buffer
MIN_SPLIT_ROWS = 1024          # only force >=2 grid steps once each half is >=1024 rows
VMEM_LIMIT_BYTES = 40 << 20    # > 2 inputs x 2 buffers x 4 MiB, < v7x 64 MiB physical


def _bce_elementwise(x, y):
    """Numerically stable BCE-with-logits terms (same formulation PyTorch uses)."""
    x = x.astype(jnp.float32)
    y = y.astype(jnp.float32)
    return jnp.maximum(x, 0.0) - x * y + jnp.log1p(jnp.exp(-jnp.abs(x)))


def _make_bce_partial_kernel(tile_rows, rows_in_last_block, apply_mask):
    """Kernel emitting a per-block (1, 8, LANES) partial sum of the BCE terms."""
    sub_tiles = tile_rows // SUBLANES

    def _partial(loss):
        # Collapse rows to an (8,128)-aligned partial: full-vreg VPU adds over the
        # leading axis, no cross-lane (XLU) reduce, unmasked full-tile store.
        return loss.reshape(sub_tiles, SUBLANES, LANES).sum(axis=0).reshape(
            1, SUBLANES, LANES
        )

    def kernel(x_ref, y_ref, o_ref):
        loss = _bce_elementwise(x_ref[...], y_ref[...])

        if not apply_mask:
            o_ref[...] = _partial(loss)
        else:
            i = pl.program_id(0)
            last = pl.num_programs(0) - 1

            @pl.when(i != last)
            def _():
                o_ref[...] = _partial(loss)

            @pl.when(i == last)
            def _():
                # Last block extends past the array; discard out-of-range rows with a
                # select (NOT a multiply) so OOB garbage / NaNs cannot propagate.
                row_ids = jax.lax.broadcasted_iota(jnp.int32, loss.shape, 0)
                masked = jnp.where(row_ids < rows_in_last_block, loss, 0.0)
                o_ref[...] = _partial(masked)

    return kernel


@jax.jit
def bce_with_logits_loss(logits, targets):
    """Mean-reduced BCEWithLogitsLoss over arbitrary (matching) shapes."""
    assert logits.shape == targets.shape
    n = logits.size
    if n == 0:
        # PyTorch's mean reduction over an empty tensor yields NaN.
        return jnp.float32(float("nan"))

    x = logits.reshape(-1)
    y = targets.reshape(-1)

    n_main = (n // LANES) * LANES   # largest 128-aligned prefix
    rows = n_main // LANES

    if rows < SUBLANES:
        # Tiny input (< 8*128 elements): a kernel launch is pure overhead.
        return jnp.sum(_bce_elementwise(x, y)) / jnp.float32(n)

    total = jnp.float32(0.0)
    if n_main < n:
        # Rare < 128-element tail when n is not a multiple of 128.
        total = total + jnp.sum(_bce_elementwise(x[n_main:], y[n_main:]))

    xm = (x if n_main == n else x[:n_main]).reshape(rows, LANES)
    ym = (y if n_main == n else y[:n_main]).reshape(rows, LANES)

    # --- tile selection -------------------------------------------------------
    # tile_rows: multiple of 8, <= rows, <= MAX_TILE_ROWS.
    tile_rows = min(MAX_TILE_ROWS, (rows // SUBLANES) * SUBLANES)
    # Prefer >= 2 balanced grid steps for large inputs so v7x megacore can shard
    # the stream across both TensorCores (no-op on single-TC v5e/v6e).
    if tile_rows == rows and rows >= 2 * MIN_SPLIT_ROWS:
        half = -(-rows // 2)                       # ceil(rows / 2)
        tile_rows = min(tile_rows, ((half + SUBLANES - 1) // SUBLANES) * SUBLANES)

    num_tiles = -(-rows // tile_rows)              # ceil division
    apply_mask = (rows % tile_rows) != 0
    rows_in_last_block = rows - (num_tiles - 1) * tile_rows

    kernel = _make_bce_partial_kernel(tile_rows, rows_in_last_block, apply_mask)

    bytes_in = n_main * (xm.dtype.itemsize + ym.dtype.itemsize)
    partials = pl.pallas_call(
        kernel,
        out_shape=jax.ShapeDtypeStruct((num_tiles, SUBLANES, LANES), jnp.float32),
        grid_spec=pltpu.PrefetchScalarGridSpec(
            num_scalar_prefetch=0,
            grid=(num_tiles,),
            in_specs=[
                pl.BlockSpec((tile_rows, LANES), lambda i: (i, 0)),
                pl.BlockSpec((tile_rows, LANES), lambda i: (i, 0)),
            ],
            out_specs=pl.BlockSpec((1, SUBLANES, LANES), lambda i: (i, 0, 0)),
        ),
        compiler_params=pltpu.CompilerParams(
            dimension_semantics=("parallel",),
            vmem_limit_bytes=VMEM_LIMIT_BYTES,
        ),
        cost_estimate=pl.CostEstimate(
            flops=6 * n_main,
            transcendentals=2 * n_main,
            bytes_accessed=bytes_in + num_tiles * SUBLANES * LANES * 4,
        ),
    )(xm, ym)

    # Tiny epilogue reduce over (num_tiles, 8, 128) partial sums.
    total = total + jnp.sum(partials)
    return total / jnp.float32(n)


if __name__ == "__main__":
    key = jax.random.PRNGKey(0)

    def reference(x, y):
        x = x.astype(jnp.float32)
        y = y.astype(jnp.float32)
        return jnp.mean(jnp.maximum(x, 0.0) - x * y + jnp.log1p(jnp.exp(-jnp.abs(x))))

    # Primary shape matches a small NCHW segmentation-style loss input; the extra
    # shapes exercise the non-128-aligned tail, the masked last block on a
    # multi-step grid, the balanced two-step split, and bf16 inputs.
    cases = [
        ((2, 4, 16, 16), jnp.float32),    # 128-aligned, single unmasked block
        ((2, 3, 17, 19), jnp.float32),    # wrapper tail + masked last grid block
        ((4, 8, 96, 96), jnp.float32),    # balanced 2-step grid, no mask
        ((2, 4, 16, 16), jnp.bfloat16),   # reduced-byte input path
    ]

    for idx, (shape, dtype) in enumerate(cases):
        k1, k2 = jax.random.split(jax.random.fold_in(key, idx))
        logits = jax.random.normal(k1, shape, dtype=jnp.float32).astype(dtype)
        targets = (jax.random.uniform(k2, shape) > 0.5).astype(dtype)

        loss = bce_with_logits_loss(logits, targets)
        jax.block_until_ready(loss)

        ref = reference(logits, targets)
        assert jnp.allclose(loss, ref, atol=1e-5, rtol=1e-5), (shape, dtype, loss, ref)

    print("KERNEL_OK")
</pallas_src>

<mosaic_0001>
module attributes {stable_mosaic.version = 11 : i64} {
  func.func @kernel(%arg0: i32, %arg1: memref<16x128xf32, #tpu.memory_space<vmem>>, %arg2: memref<16x128xf32, #tpu.memory_space<vmem>>, %arg3: memref<1x8x128xf32, #tpu.memory_space<vmem>>) attributes {dimension_semantics = [#tpu.dimension_semantics<parallel>], iteration_bounds = array<i64: 1>, scalar_prefetch = 0 : i64, scratch_operands = 0 : i64, tpu.core_type = #tpu.core_type<tc>, window_params = [{transform_indices = @transform_0, window_bounds = array<i64: 16, 128>}, {transform_indices = @transform_1, window_bounds = array<i64: 16, 128>}, {transform_indices = @transform_2, window_bounds = array<i64: 1, 8, 128>}]} {
    %c0 = arith.constant 0 : index
    %c0_0 = arith.constant 0 : index
    %0 = vector.load %arg1[%c0, %c0_0] : memref<16x128xf32, #tpu.memory_space<vmem>>, vector<16x128xf32>
    %c0_1 = arith.constant 0 : index
    %c0_2 = arith.constant 0 : index
    %1 = vector.load %arg2[%c0_1, %c0_2] : memref<16x128xf32, #tpu.memory_space<vmem>>, vector<16x128xf32>
    %cst = arith.constant 0.000000e+00 : f32
    %2 = vector.broadcast %cst : f32 to vector<16x128xf32>
    %3 = arith.maximumf %0, %2 : vector<16x128xf32>
    %4 = arith.mulf %0, %1 : vector<16x128xf32>
    %5 = arith.subf %3, %4 : vector<16x128xf32>
    %6 = math.absf %0 : vector<16x128xf32>
    %cst_3 = arith.constant 0.000000e+00 : f32
    %7 = vector.broadcast %cst_3 : f32 to vector<16x128xf32>
    %8 = arith.subf %7, %6 : vector<16x128xf32>
    %9 = math.exp %8 : vector<16x128xf32>
    %10 = math.log1p %9 : vector<16x128xf32>
    %11 = arith.addf %5, %10 : vector<16x128xf32>
    %12 = vector.shape_cast %11 : vector<16x128xf32> to vector<2x8x128xf32>
    %cst_4 = arith.constant dense<0.000000e+00> : vector<8x128xf32>
    %13 = vector.multi_reduction <add>, %12, %cst_4 [0] : vector<2x8x128xf32> to vector<8x128xf32>
    %14 = vector.shape_cast %13 : vector<8x128xf32> to vector<1x8x128xf32>
    %c0_5 = arith.constant 0 : index
    %c0_6 = arith.constant 0 : index
    %c0_7 = arith.constant 0 : index
    %15 = vector.load %arg3[%c0_5, %c0_6, %c0_7] : memref<1x8x128xf32, #tpu.memory_space<vmem>>, vector<1x8x128xf32>
    tpu.vector_store %arg3[%c0_5, %c0_6, %c0_7], %14 {strides = array<i32>} : memref<1x8x128xf32, #tpu.memory_space<vmem>>, vector<1x8x128xf32>,
    return
  }
  func.func @transform_0(%arg0: i32) -> (i32, i32) {
    %c0_i32 = arith.constant 0 : i32
    %c0_i32_0 = arith.constant 0 : i32
    return %arg0, %c0_i32 : i32, i32
  }
  func.func @transform_1(%arg0: i32) -> (i32, i32) {
    %c0_i32 = arith.constant 0 : i32
    %c0_i32_0 = arith.constant 0 : i32
    return %arg0, %c0_i32 : i32, i32
  }
  func.func @transform_2(%arg0: i32) -> (i32, i32, i32) {
    %c0_i32 = arith.constant 0 : i32
    %c0_i32_0 = arith.constant 0 : i32
    %c0_i32_1 = arith.constant 0 : i32
    return %arg0, %c0_i32, %c0_i32_0 : i32, i32, i32
  }
}

</mosaic_0001>

<llo_original>
// kernel: bce_with_logits_loss.1
$region0: #{bce_with_logits_loss.1}
  #allocation0 [shape = 'u32[]', space=smem, size = 0x4, offset = 0x4, fixed_abs, tag = 'smem constant byte address 0x4 - core index']
  #allocation1 [shape = 'u32[144,128]{1,0:T(1,128)}', space=vmem, size = 0x12000, scoped, tag = 'internal scratch']
  %s0 = inlined_call_operand.vmem [shape: f32[16,128], index: 0, kind: input, shape index: {}]
  %s1 = inlined_call_operand.vmem [shape: f32[16,128], index: 1, kind: input, shape index: {}]
  %s2 = inlined_call_operand.vmem [shape: f32[1,8,128], index: 2, kind: output, shape index: {}]
  %s3 = sld [smem:[#allocation0]]
  $region18: #{bce_with_logits_loss.1} parent=0
    _
  %s5 = ssub.s32 1, %s3
  %s6 = scalar_select 0, %s5, %s3
  // Predicated region
  $region2: #{bce_with_logits_loss.1} parent=0 // pred_check
    _
  $region3: #{bce_with_logits_loss.1} parent=0 // pred_check_branch
    %8 = sbr.rel (0) target = $region5
  $region4: #{bce_with_logits_loss.1} parent=0 // pred_region
    _
  $region5: #{bce_with_logits_loss.1} parent=0 // pred_fallthru
    _
  // Predicated region
  $region6: #{bce_with_logits_loss.1} parent=0 // pred_check
    _
  $region7: #{bce_with_logits_loss.1} parent=0 // pred_check_branch
    %10 = sbr.rel (0) target = $region9
  $region8: #{bce_with_logits_loss.1} parent=0 // pred_region
    _
  $region9: #{bce_with_logits_loss.1} parent=0 // pred_fallthru
    _
  %v11 = vld [vmem:[%s0] sm:$0xff]
  %v12 = vld [vmem:[%s0 + $0x8] sm:$0xff]
  %v13 = vld [vmem:[%s1] sm:$0xff]
  %v14 = vld [vmem:[%s1 + $0x8] sm:$0xff]
  %v15 = vmax.f32 %v11, 0.0
  %v16 = vmax.f32 %v12, 0.0
  %v17 = vmul.f32 %v11, %v13
  %v18 = vmul.f32 %v12, %v14
  %v19 = vsub.f32 %v15, %v17
  %v20 = vsub.f32 %v16, %v18
  %v21 = vand.u32 2147483647, %v11
  %v22 = vand.u32 2147483647, %v12
  %v23 = vsub.f32 0.0, %v21
  %v24 = vsub.f32 0.0, %v22
  %v25 = vmul.f32 %v23, 1.442695
  %v26 = vpow.pop %v25
  %v27 = vmul.f32 %v24, 1.442695
  %v28 = vpow.pop %v27
  %v29 = vadd.f32 %v26, 1.0
  %v30 = vlog2.pop %v29
  %v31 = vmul.f32 %v30, 0.6931472
  %v32 = vmul.f32 -0.5, %v26
  %v33 = vadd.f32 %v32, 1.0
  %v34 = vmul.f32 %v33, %v26
  %v35 = vand.u32 2147483647, %v26
  %vm36 = vcmp.lt.f32.partialorder %v35, 0.0004427343
  %v37 = vsel %vm36, %v34, %v31
  %v38 = vadd.f32 %v28, 1.0
  %v39 = vlog2.pop %v38
  %v40 = vmul.f32 %v39, 0.6931472
  %v41 = vmul.f32 -0.5, %v28
  %v42 = vadd.f32 %v41, 1.0
  %v43 = vmul.f32 %v42, %v28
  %v44 = vand.u32 2147483647, %v28
  %vm45 = vcmp.lt.f32.partialorder %v44, 0.0004427343
  %v46 = vsel %vm45, %v43, %v40
  %v47 = vadd.f32 %v19, %v37
  %v48 = vadd.f32 %v20, %v46
  %v49 = vadd.f32 %v47, %v48
  %50 = vst [vmem:[%s2] sm:$0xff] %v49
  // Predicated region
  $region10: #{bce_with_logits_loss.1} parent=0 // pred_check
    _
  $region11: #{bce_with_logits_loss.1} parent=0 // pred_check_branch
    %52 = sbr.rel (0) target = $region13
  $region12: #{bce_with_logits_loss.1} parent=0 // pred_region
    _
  $region13: #{bce_with_logits_loss.1} parent=0 // pred_fallthru
    _
  // Predicated region
  $region14: #{bce_with_logits_loss.1} parent=0 // pred_check
    _
  $region15: #{bce_with_logits_loss.1} parent=0 // pred_check_branch
    %54 = sbr.rel (0) target = $region17
  $region16: #{bce_with_logits_loss.1} parent=0 // pred_region
    _
  $region17: #{bce_with_logits_loss.1} parent=0 // pred_fallthru
    _

</llo_original>
